<compile_context>
chip_gen: v7x
topology: tpu7x:2x2x1
jax: 0.10.0
libtpu: 0.0.40
codegen_flags: <defaults>
</compile_context>

<pallas_src>
import functools

import jax
import jax.numpy as jnp
from jax.experimental import pallas as pl
from jax.experimental.pallas import tpu as pltpu


def _round_up(x, m):
    return (x + m - 1) // m * m


def _sublane_multiple(dtype):
    # Native packed sublane tile: 8 rows (4-byte), 16 (2-byte), 32 (1-byte).
    itemsize = jnp.dtype(dtype).itemsize
    return max(8, 32 // max(1, itemsize))


def _vmem_capacity_bytes():
    # Generation aware: 64 MiB / TC on v7x, 128 MiB on v5e / v6e.
    try:
        return int(pltpu.get_tpu_info().vmem_capacity_bytes)
    except Exception:
        return 64 * 1024 * 1024  # v7x-safe fallback


# ---------------------------------------------------------------------------
# AddOp: out = in1 + in2   (pure elementwise, VPU, memory-bound)
# ---------------------------------------------------------------------------
def _add_kernel(a_ref, b_ref, o_ref):
    o_ref[...] = a_ref[...] + b_ref[...]


def add_op(in1, in2, lengths=None, encoder_state=None, *, block_rows=4096):
    """AddOp.forward — in1, in2: (B, T, H)."""
    assert in1.shape == in2.shape and in1.dtype == in2.dtype
    B, T, H = in1.shape
    M = B * T
    item = jnp.dtype(in1.dtype).itemsize
    sub = _sublane_multiple(in1.dtype)

    # ~2 MiB per operand tile (>=85% of HBM roofline), capped by block_rows / M.
    tm = max(sub, min(block_rows, (2 << 20) // max(1, H * item), _round_up(M, sub)))
    tm = _round_up(tm, sub)
    grid_m = pl.cdiv(M, tm)
    if grid_m < 2 and M > sub:  # give both v7x TensorCores at least one step
        tm = _round_up(pl.cdiv(M, 2), sub)
        grid_m = pl.cdiv(M, tm)

    a = in1.reshape(M, H)  # free views, no HBM pass
    b = in2.reshape(M, H)

    out = pl.pallas_call(
        _add_kernel,
        out_shape=jax.ShapeDtypeStruct((M, H), in1.dtype),
        grid=(grid_m,),
        in_specs=[
            pl.BlockSpec((tm, H), lambda i: (i, 0)),
            pl.BlockSpec((tm, H), lambda i: (i, 0)),
        ],
        out_specs=pl.BlockSpec((tm, H), lambda i: (i, 0)),
        compiler_params=pltpu.CompilerParams(
            dimension_semantics=("parallel",)),
        cost_estimate=pl.CostEstimate(
            flops=M * H, transcendentals=0, bytes_accessed=3 * M * H * item),
    )(a, b)
    return out.reshape(B, T, H)


# ---------------------------------------------------------------------------
# ConcatOp: out = Conv1d(2H, H, k=1)(cat(in1, in2)) == per-position linear
# ---------------------------------------------------------------------------
def prepare_concat_params(weight, bias, compute_dtype=None):
    """Hoistable / cacheable ConcatOp parameter prep (transpose + cast once).

    weight : (H, 2H)  Conv1d(2H, H, kernel_size=1) weight, kernel dim squeezed.
    bias   : (H,)
    Returns (w1t, w2t, b2d): two (H, H) transposed weight halves (pre-cast to
    the compute dtype) and an f32 (1, H) bias row.
    """
    H, twoH = weight.shape
    assert twoH == 2 * H and bias.shape == (H,)
    w_dtype = compute_dtype if compute_dtype is not None else weight.dtype
    w1t = weight[:, :H].T.astype(w_dtype)   # acts on in1
    w2t = weight[:, H:].T.astype(w_dtype)   # acts on in2
    b2d = bias.reshape(1, H).astype(jnp.float32)
    return w1t, w2t, b2d


def _concat_kernel(x1_ref, x2_ref, w1_ref, w2_ref, b_ref, o_ref, *, compute_dtype):
    # x1/x2: (TM, H) activation tiles; w1/w2: (H, H) resident transposed weight
    # halves; b: (1, H) f32 bias.  Two accumulated MXU matmuls replace the old
    # in-kernel concat + K=2H matmul (no VMEM copy of the input tiles).
    # Activations are cast in-kernel (VPU) so there is no extra HBM pass.
    x1 = x1_ref[...]
    x2 = x2_ref[...]
    if compute_dtype is not None:
        x1 = x1.astype(compute_dtype)
        x2 = x2.astype(compute_dtype)
    acc = jnp.dot(x1, w1_ref[...], preferred_element_type=jnp.float32)
    acc = acc + jnp.dot(x2, w2_ref[...], preferred_element_type=jnp.float32)
    acc = acc + b_ref[...]
    o_ref[...] = acc.astype(o_ref.dtype)


def concat_op(in1, in2, weight=None, bias=None, lengths=None, encoder_state=None, *,
              params=None, compute_dtype=None, block_m=2048):
    """ConcatOp.forward.

    in1, in2      : (B, T, H)
    weight        : (H, 2H)   (ignored if `params` is given)
    bias          : (H,)      (ignored if `params` is given)
    params        : optional cached output of prepare_concat_params — hoists the
                    per-call weight transpose/cast out of the forward path.
    compute_dtype : e.g. jnp.bfloat16 for v6e/v7x MXU peak (f32 accumulation,
                    output keeps the input dtype). None = exact input dtype.
    """
    B, T, H = in1.shape
    assert in2.shape == (B, T, H) and in1.dtype == in2.dtype
    if params is None:
        params = prepare_concat_params(weight, bias, compute_dtype)
    w1t, w2t, b2d = params
    assert w1t.shape == (H, H) and w2t.shape == (H, H) and b2d.shape == (1, H)

    out_dtype = in1.dtype
    M = B * T
    in_item = jnp.dtype(in1.dtype).itemsize
    out_item = jnp.dtype(out_dtype).itemsize
    w_item = jnp.dtype(w1t.dtype).itemsize
    cd_item = jnp.dtype(compute_dtype).itemsize if compute_dtype is not None else in_item
    sub = _sublane_multiple(in1.dtype)

    # Resident weight halves + bias; counted 2x for pipeline buffering.
    w_bytes = 2 * (2 * H * H * w_item + H * 4)

    def vmem_need(tm):
        act = 2 * 2 * tm * H * in_item          # x1, x2 tiles, double-buffered
        out = 2 * tm * H * out_item             # out tile, double-buffered
        tmp = tm * H * 4                        # f32 accumulator
        if compute_dtype is not None:
            tmp += 2 * tm * H * cd_item         # in-kernel cast temporaries
        return w_bytes + act + out + tmp

    capacity = _vmem_capacity_bytes()
    budget = int(capacity * 0.75)               # ~48 MiB v7x, ~96 MiB v5e/v6e
    tm = _round_up(min(block_m, _round_up(M, sub)), sub)
    while tm > sub and vmem_need(tm) > budget:
        tm = _round_up(max(sub, tm // 2), sub)
    grid_m = pl.cdiv(M, tm)
    if grid_m < 2 and M > sub:                  # keep both v7x TCs busy
        tm = _round_up(pl.cdiv(M, 2), sub)
        grid_m = pl.cdiv(M, tm)

    x1 = in1.reshape(M, H)                      # free views, no HBM pass
    x2 = in2.reshape(M, H)

    flops = 2 * M * (2 * H) * H
    bytes_accessed = (2 * M * H * in_item + M * H * out_item
                      + 2 * H * H * w_item + H * 4)
    vmem_limit = min(capacity, max(vmem_need(tm) + (8 << 20), 32 << 20))

    # TODO(synk): for very large H on v7x (64 MiB VMEM), add an N/K-tiled weight
    # grid axis ("arbitrary") with an f32 accumulator scratch instead of keeping
    # both weight halves fully resident.

    kernel = functools.partial(_concat_kernel, compute_dtype=compute_dtype)
    out = pl.pallas_call(
        kernel,
        out_shape=jax.ShapeDtypeStruct((M, H), out_dtype),
        grid=(grid_m,),
        in_specs=[
            pl.BlockSpec((tm, H), lambda i: (i, 0)),
            pl.BlockSpec((tm, H), lambda i: (i, 0)),
            pl.BlockSpec((H, H), lambda i: (0, 0)),   # resident W1^T
            pl.BlockSpec((H, H), lambda i: (0, 0)),   # resident W2^T
            pl.BlockSpec((1, H), lambda i: (0, 0)),   # resident bias
        ],
        out_specs=pl.BlockSpec((tm, H), lambda i: (i, 0)),
        compiler_params=pltpu.CompilerParams(
            dimension_semantics=("parallel",),
            vmem_limit_bytes=int(vmem_limit),
        ),
        cost_estimate=pl.CostEstimate(
            flops=flops, transcendentals=0, bytes_accessed=int(bytes_accessed)),
    )(x1, x2, w1t, w2t, b2d)

    return out.reshape(B, T, H)


# ---------------------------------------------------------------------------
# Demo / self-check
# ---------------------------------------------------------------------------
if __name__ == "__main__":
    root = jax.random.PRNGKey(0)

    def run_case(B, T, H):
        key = jax.random.fold_in(root, B * 10000 + T * 100 + H)
        k1, k2, kw, kb = jax.random.split(key, 4)
        in1 = jax.random.normal(k1, (B, T, H), dtype=jnp.float32)
        in2 = jax.random.normal(k2, (B, T, H), dtype=jnp.float32)
        bound = float(1.0 / (2.0 * H) ** 0.5)
        weight = jax.random.uniform(kw, (H, 2 * H), jnp.float32, -bound, bound)
        bias = jax.random.uniform(kb, (H,), jnp.float32, -bound, bound)

        # --- AddOp ---
        add_out = jax.block_until_ready(add_op(in1, in2))
        assert add_out.shape == (B, T, H)
        assert jnp.allclose(add_out, in1 + in2, atol=1e-6), "AddOp mismatch"

        # --- ConcatOp reference ---
        cat_ref = (jnp.einsum("bti,oi->bto",
                              jnp.concatenate([in1, in2], axis=-1), weight) + bias)

        # Exact (f32) path, with hoisted / cached params.
        params_f32 = prepare_concat_params(weight, bias)
        cat_out = jax.block_until_ready(concat_op(in1, in2, params=params_f32))
        assert cat_out.shape == (B, T, H)
        assert jnp.allclose(cat_out, cat_ref, atol=2e-4), "ConcatOp f32 mismatch"

        # bf16 MXU path (v6e/v7x peak); dtype-dependent tolerance.
        params_bf16 = prepare_concat_params(weight, bias, compute_dtype=jnp.bfloat16)
        cat_bf16 = jax.block_until_ready(
            concat_op(in1, in2, params=params_bf16, compute_dtype=jnp.bfloat16))
        assert cat_bf16.shape == (B, T, H)
        assert jnp.allclose(cat_bf16, cat_ref, rtol=5e-2, atol=5e-2), \
            "ConcatOp bf16 mismatch"

    run_case(2, 8, 32)   # B*T multiple of 8
    run_case(3, 5, 32)   # ragged B*T = 15 exercises the pl.cdiv tail block
    print("KERNEL_OK")
</pallas_src>

<mosaic_0001>
module attributes {stable_mosaic.version = 11 : i64} {
  func.func @_add_kernel(%arg0: i32, %arg1: memref<8x32xf32, #tpu.memory_space<vmem>>, %arg2: memref<8x32xf32, #tpu.memory_space<vmem>>, %arg3: memref<8x32xf32, #tpu.memory_space<vmem>>) attributes {dimension_semantics = [#tpu.dimension_semantics<parallel>], iteration_bounds = array<i64: 2>, scalar_prefetch = 0 : i64, scratch_operands = 0 : i64, tpu.core_type = #tpu.core_type<tc>, window_params = [{transform_indices = @transform_0, window_bounds = array<i64: 8, 32>}, {transform_indices = @transform_1, window_bounds = array<i64: 8, 32>}, {transform_indices = @transform_2, window_bounds = array<i64: 8, 32>}]} {
    %c0 = arith.constant 0 : index
    %c0_0 = arith.constant 0 : index
    %0 = vector.load %arg1[%c0, %c0_0] : memref<8x32xf32, #tpu.memory_space<vmem>>, vector<8x32xf32>
    %c0_1 = arith.constant 0 : index
    %c0_2 = arith.constant 0 : index
    %1 = vector.load %arg2[%c0_1, %c0_2] : memref<8x32xf32, #tpu.memory_space<vmem>>, vector<8x32xf32>
    %2 = arith.addf %0, %1 : vector<8x32xf32>
    %c0_3 = arith.constant 0 : index
    %c0_4 = arith.constant 0 : index
    %3 = vector.load %arg3[%c0_3, %c0_4] : memref<8x32xf32, #tpu.memory_space<vmem>>, vector<8x32xf32>
    tpu.vector_store %arg3[%c0_3, %c0_4], %2 {strides = array<i32>} : memref<8x32xf32, #tpu.memory_space<vmem>>, vector<8x32xf32>,
    return
  }
  func.func @transform_0(%arg0: i32) -> (i32, i32) {
    %c0_i32 = arith.constant 0 : i32
    %c0_i32_0 = arith.constant 0 : i32
    return %arg0, %c0_i32 : i32, i32
  }
  func.func @transform_1(%arg0: i32) -> (i32, i32) {
    %c0_i32 = arith.constant 0 : i32
    %c0_i32_0 = arith.constant 0 : i32
    return %arg0, %c0_i32 : i32, i32
  }
  func.func @transform_2(%arg0: i32) -> (i32, i32) {
    %c0_i32 = arith.constant 0 : i32
    %c0_i32_0 = arith.constant 0 : i32
    return %arg0, %c0_i32 : i32, i32
  }
}

</mosaic_0001>

<llo_original>
// kernel: tpu_custom_call.1
$region0: #{tpu_custom_call.1}
  #allocation0 [shape = 'u32[]', space=smem, size = 0x4, offset = 0x4, fixed_abs, tag = 'smem constant byte address 0x4 - core index']
  #allocation1 [shape = 'u32[144,128]{1,0:T(1,128)}', space=vmem, size = 0x12000, scoped, tag = 'internal scratch']
  %s0 = inlined_call_operand.hbm [shape: f32[16,32], index: 0, kind: input, shape index: {}]
  %s1 = inlined_call_operand.hbm [shape: f32[16,32], index: 1, kind: input, shape index: {}]
  %s2 = inlined_call_operand.hbm [shape: f32[16,32], index: 2, kind: output, shape index: {}]
  %s3 = sld [smem:[#allocation0]]
  $region49: #{tpu_custom_call.1} parent=0
    _
  %s5 = ssub.s32 1, %s3
  %s6 = scalar_select 0, %s5, %s3
  $region1: #{tpu_custom_call.1} parent=0
    #allocation2 [shape = 'u8[8192]{0}', space=vmem, size = 0x2000, scoped, tag = 'input window, operand 0']
    #allocation3 [shape = 's32[2]{0}', space=sflag, size = 0x8, scoped, tag = 'scoped memory for tpu_custom_call.1']
    #allocation4 [shape = 's32[2]{0}', space=sflag, size = 0x8, scoped, tag = 'scoped memory for tpu_custom_call.1']
    #allocation5 [shape = 'u8[8192]{0}', space=vmem, size = 0x2000, scoped, tag = 'input window, operand 1']
    #allocation6 [shape = 's32[2]{0}', space=sflag, size = 0x8, scoped, tag = 'scoped memory for tpu_custom_call.1']
    #allocation7 [shape = 'u8[8192]{0}', space=vmem, size = 0x2000, scoped, tag = 'output window, operand 0']
    %7 = vsyncpa [#allocation3], 0
    %s8 = scalar_lea.sflag [#allocation3], 1
    %9 = vsyncpa %s8, 0
    %10 = vsyncpa [#allocation6], 0
    %s11 = scalar_lea.sflag [#allocation6], 1
    %12 = vsyncpa %s11, 0
    %13 = vsyncpa [#allocation4], 0
    %s14 = scalar_lea.sflag [#allocation4], 1
    %15 = vsyncpa %s14, 0
    loop: start=0, step=1, limit=4
    $region2: #{tpu_custom_call.1} parent=1 // loop_pre_header
      _
    $region3: #{tpu_custom_call.1} parent=1 // loop_header
      %s17 = sphi 0, %s21
      %p18 = scmp.ge.s32.totalorder %s17, 4
      %s27 = sphi 0, %s29
      %s30 = sphi 0, %s27
      %s31 = sphi 0, %s30
      %s47 = sphi 0, %s31
      %s53 = sphi 0, %s55
      %s56 = sphi 0, %s53
      %s57 = sphi 0, %s56
      %s73 = sphi 0, %s57
      %s79 = sphi 0, %s81
      %s82 = sphi 0, %s79
      %s83 = sphi 0, %s82
      %s99 = sphi 0, %s83
    $region4: #{tpu_custom_call.1} parent=1 // loop_header_branch
      %20 = sbr.rel (%p18) target = $region8
    $region5: #{tpu_custom_call.1} parent=1 // loop_body
      %s22 = ssub.s32 %s17, 1
      %s23 = ssub.s32 %s17, 2
      %s24 = sadd.s32 %s17, 1
      %s25 = ssub.s32 %s17, %s24
      %p26 = scmp.eq.s32.totalorder %s25, 0
      %s28 = sadd.s32 %s27, 1
      %s29 = scalar_select %p26, %s27, %s28
      %p32 = pneg %p26
      %p33 = scmp.eq.s32.totalorder %s17, 1
      %p34 = por %p32, %p33
      %p35 = scmp.ne.s32.totalorder %s27, %s30
      %p36 = scmp.eq.s32.totalorder %s17, 0
      %p37 = por %p35, %p36
      %p38 = scmp.ne.s32.totalorder %s27, %s30
      %p39 = scmp.eq.s32.totalorder %s22, 1
      %p40 = por %p38, %p39
      %p41 = scmp.ne.s32.totalorder %s30, %s31
      %p42 = scmp.eq.s32.totalorder %s22, 0
      %p43 = por %p41, %p42
      %p44 = scmp.ne.s32.totalorder %s30, %s31
      %p45 = scmp.eq.s32.totalorder %s23, 1
      %p46 = por %p44, %p45
      %p48 = scmp.ne.s32.totalorder %s31, %s47
      %p49 = scmp.eq.s32.totalorder %s23, 0
      %p50 = por %p48, %p49
      %s51 = ssub.s32 %s17, %s24
      %p52 = scmp.eq.s32.totalorder %s51, 0
      %s54 = sadd.s32 %s53, 1
      %s55 = scalar_select %p52, %s53, %s54
      %p58 = pneg %p52
      %p59 = scmp.eq.s32.totalorder %s17, 1
      %p60 = por %p58, %p59
      %p61 = scmp.ne.s32.totalorder %s53, %s56
      %p62 = scmp.eq.s32.totalorder %s17, 0
      %p63 = por %p61, %p62
      %p64 = scmp.ne.s32.totalorder %s53, %s56
      %p65 = scmp.eq.s32.totalorder %s22, 1
      %p66 = por %p64, %p65
      %p67 = scmp.ne.s32.totalorder %s56, %s57
      %p68 = scmp.eq.s32.totalorder %s22, 0
      %p69 = por %p67, %p68
      %p70 = scmp.ne.s32.totalorder %s56, %s57
      %p71 = scmp.eq.s32.totalorder %s23, 1
      %p72 = por %p70, %p71
      %p74 = scmp.ne.s32.totalorder %s57, %s73
      %p75 = scmp.eq.s32.totalorder %s23, 0
      %p76 = por %p74, %p75
      %s77 = ssub.s32 %s17, %s24
      %p78 = scmp.eq.s32.totalorder %s77, 0
      %s80 = sadd.s32 %s79, 1
      %s81 = scalar_select %p78, %s79, %s80
      %p84 = pneg %p78
      %p85 = scmp.eq.s32.totalorder %s17, 1
      %p86 = por %p84, %p85
      %p87 = scmp.ne.s32.totalorder %s79, %s82
      %p88 = scmp.eq.s32.totalorder %s17, 0
      %p89 = por %p87, %p88
      %p90 = scmp.ne.s32.totalorder %s79, %s82
      %p91 = scmp.eq.s32.totalorder %s22, 1
      %p92 = por %p90, %p91
      %p93 = scmp.ne.s32.totalorder %s82, %s83
      %p94 = scmp.eq.s32.totalorder %s22, 0
      %p95 = por %p93, %p94
      %p96 = scmp.ne.s32.totalorder %s82, %s83
      %p97 = scmp.eq.s32.totalorder %s23, 1
      %p98 = por %p96, %p97
      %p100 = scmp.ne.s32.totalorder %s83, %s99
      %p101 = scmp.eq.s32.totalorder %s23, 0
      %p102 = por %p100, %p101
      %p103 = scmp.le.s32.totalorder 1, %s17
      %p104 = scmp.lt.s32.totalorder %s17, 3
      %p105 = pnand %p103, %p104
      %p106 = pneg %p105
      // Predicated region
      $region9: #{tpu_custom_call.1} parent=5 // pred_check
        _
      $region10: #{tpu_custom_call.1} parent=5 // pred_check_branch
        %108 = sbr.rel (%p105) target = $region12
      $region11: #{tpu_custom_call.1} parent=5 // pred_region
        %s109 = ssub.s32 %s17, 1
      $region12: #{tpu_custom_call.1} parent=5 // pred_fallthru
        _
      %p110 = scmp.lt.s32.totalorder %s17, 2
      // Predicated region
      $region13: #{tpu_custom_call.1} parent=5 // pred_check
        %p111 = pneg %p110
      $region14: #{tpu_custom_call.1} parent=5 // pred_check_branch
        %113 = sbr.rel (%p111) target = $region16
      $region15: #{tpu_custom_call.1} parent=5 // pred_region
        // Predicated region
        $region17: #{tpu_custom_call.1} parent=15 // pred_check
          %p114 = pneg %p37
        $region18: #{tpu_custom_call.1} parent=15 // pred_check_branch
          %116 = sbr.rel (%p114) target = $region20
        $region19: #{tpu_custom_call.1} parent=15 // pred_region
          %s117 = sand.u32 %s27, 1
          %s118 = scalar_lea.sflag [#allocation3], %s117
          %s119 = sand.u32 %s27, 1
          %s120 = smul.addr %s119, 8
          %s121 = scalar_lea.vmem [#allocation2], %s120
          %s123 = ssub.s32 128, 128
          %124 = vsyncadd %s118, %s123
          %s125 = smul.addr %s17, 128
          %s126 = scalar_lea.hbm %s0, %s125
          %s128 = sshll.u32 %s121, 4
          %s129 = int_to_ptr.vmem [resolvable:$true] %s128
          %131 = dma.hbm_to_vmem [thread:$0]  %s126, 128, %s129, %s118
        $region20: #{tpu_custom_call.1} parent=15 // pred_fallthru
          _
        // Predicated region
        $region21: #{tpu_custom_call.1} parent=15 // pred_check
          %p132 = pneg %p63
        $region22: #{tpu_custom_call.1} parent=15 // pred_check_branch
          %134 = sbr.rel (%p132) target = $region24
        $region23: #{tpu_custom_call.1} parent=15 // pred_region
          %s135 = sand.u32 %s53, 1
          %s136 = scalar_lea.sflag [#allocation6], %s135
          %s137 = sand.u32 %s53, 1
          %s138 = smul.addr %s137, 8
          %s139 = scalar_lea.vmem [#allocation5], %s138
          %s141 = ssub.s32 128, 128
          %142 = vsyncadd %s136, %s141
          %s143 = smul.addr %s17, 128
          %s144 = scalar_lea.hbm %s1, %s143
          %s146 = sshll.u32 %s139, 4
          %s147 = int_to_ptr.vmem [resolvable:$true] %s146
          %149 = dma.hbm_to_vmem [thread:$0]  %s144, 128, %s147, %s136
        $region24: #{tpu_custom_call.1} parent=15 // pred_fallthru
          _
      $region16: #{tpu_custom_call.1} parent=5 // pred_fallthru
        _
      %p150 = scmp.le.s32.totalorder 1, %s17
      %p151 = scmp.lt.s32.totalorder %s17, 3
      %p152 = pnand %p150, %p151
      %p153 = pneg %p152
      // Predicated region
      $region25: #{tpu_custom_call.1} parent=5 // pred_check
        _
      $region26: #{tpu_custom_call.1} parent=5 // pred_check_branch
        %155 = sbr.rel (%p152) target = $region28
      $region27: #{tpu_custom_call.1} parent=5 // pred_region
        %s156 = ssub.s32 %s17, 1
        %s157 = sand.u32 %s30, 1
        %s158 = scalar_lea.sflag [#allocation3], %s157
        %s159 = sand.u32 %s30, 1
        %s160 = smul.addr %s159, 8
        %s161 = scalar_lea.vmem [#allocation2], %s160
        // Predicated region
        $region29: #{tpu_custom_call.1} parent=27 // pred_check
          %p162 = pneg %p43
        $region30: #{tpu_custom_call.1} parent=27 // pred_check_branch
          %164 = sbr.rel (%p162) target = $region32
        $region31: #{tpu_custom_call.1} parent=27 // pred_region
          %165 = dma.done %s158, 128
        $region32: #{tpu_custom_call.1} parent=27 // pred_fallthru
          _
        %s166 = sand.u32 %s56, 1
        %s167 = scalar_lea.sflag [#allocation6], %s166
        %s168 = sand.u32 %s56, 1
        %s169 = smul.addr %s168, 8
        %s170 = scalar_lea.vmem [#allocation5], %s169
        // Predicated region
        $region33: #{tpu_custom_call.1} parent=27 // pred_check
          %p171 = pneg %p69
        $region34: #{tpu_custom_call.1} parent=27 // pred_check_branch
          %173 = sbr.rel (%p171) target = $region36
        $region35: #{tpu_custom_call.1} parent=27 // pred_region
          %174 = dma.done %s167, 128
        $region36: #{tpu_custom_call.1} parent=27 // pred_fallthru
          _
        %s175 = sand.u32 %s30, 1
        %s176 = scalar_lea.sflag [#allocation3], %s175
        %s177 = sand.u32 %s30, 1
        %s178 = smul.addr %s177, 8
        %s179 = scalar_lea.vmem [#allocation2], %s178
        %p180 = pneg %p43
        %p181 = pneg %p40
        %s182 = sand.u32 %s56, 1
        %s183 = scalar_lea.sflag [#allocation6], %s182
        %s184 = sand.u32 %s56, 1
        %s185 = smul.addr %s184, 8
        %s186 = scalar_lea.vmem [#allocation5], %s185
        %p187 = pneg %p69
        %p188 = pneg %p66
        %p189 = pneg %p95
        %p190 = pneg %p92
        %s191 = sand.u32 %s82, 1
        %s192 = scalar_lea.sflag [#allocation4], %s191
        %s193 = sand.u32 %s82, 1
        %s194 = smul.addr %s193, 8
        %s195 = scalar_lea.vmem [#allocation7], %s194
        %v196 = vld [vmem:[%s161] sm:$0xff]
        %v197 = vld [vmem:[%s170] sm:$0xff]
        %v198 = vadd.f32 %v196, %v197
        %vm199 = vcmask 261120
        %200 = vst.msk [vmem:[%s195] sm:$0xff] %vm199, %v198
        %s201 = sand.u32 %s82, 1
        %s202 = scalar_lea.sflag [#allocation4], %s201
        %s203 = sand.u32 %s82, 1
        %s204 = smul.addr %s203, 8
        %s205 = scalar_lea.vmem [#allocation7], %s204
        // Predicated region
        $region37: #{tpu_custom_call.1} parent=27 // pred_check
          %p206 = pneg %p92
        $region38: #{tpu_custom_call.1} parent=27 // pred_check_branch
          %208 = sbr.rel (%p206) target = $region40
        $region39: #{tpu_custom_call.1} parent=27 // pred_region
          %s210 = ssub.s32 128, 128
          %211 = vsyncadd %s202, %s210
          %s212 = smul.addr %s22, 128
          %s213 = scalar_lea.hbm %s2, %s212
          %s215 = sshll.u32 %s205, 4
          %s216 = int_to_ptr.vmem [resolvable:$true] %s215
          %218 = dma.vmem_to_hbm [thread:$0]  %s216, 128, %s213, %s202
        $region40: #{tpu_custom_call.1} parent=27 // pred_fallthru
          _
      $region28: #{tpu_custom_call.1} parent=5 // pred_fallthru
        _
      %p219 = scmp.le.s32.totalorder 2, %s17
      // Predicated region
      $region41: #{tpu_custom_call.1} parent=5 // pred_check
        %p220 = pneg %p219
      $region42: #{tpu_custom_call.1} parent=5 // pred_check_branch
        %222 = sbr.rel (%p220) target = $region44
      $region43: #{tpu_custom_call.1} parent=5 // pred_region
        %s223 = ssub.s32 %s17, 2
        // Predicated region
        $region45: #{tpu_custom_call.1} parent=43 // pred_check
          %p224 = pneg %p98
        $region46: #{tpu_custom_call.1} parent=43 // pred_check_branch
          %226 = sbr.rel (%p224) target = $region48
        $region47: #{tpu_custom_call.1} parent=43 // pred_region
          %s227 = sand.u32 %s83, 1
          %s228 = scalar_lea.sflag [#allocation4], %s227
          %s229 = sand.u32 %s83, 1
          %s230 = smul.addr %s229, 8
          %s231 = scalar_lea.vmem [#allocation7], %s230
          %232 = dma.done %s228, 128
        $region48: #{tpu_custom_call.1} parent=43 // pred_fallthru
          _
      $region44: #{tpu_custom_call.1} parent=5 // pred_fallthru
        _
    $region6: #{tpu_custom_call.1} parent=1 // loop_footer
      %s21 = sadd.s32 1, %s17
    $region7: #{tpu_custom_call.1} parent=1 // loop_footer_branch
      %16 = sbr.rel target = $region3
    $region8: #{tpu_custom_call.1} parent=1 // loop_exit
      _
    %233 = vsyncpa [#allocation3], 1
    %s234 = scalar_lea.sflag [#allocation3], 1
    %235 = vsyncpa %s234, 1
    %236 = vsyncpa [#allocation6], 1
    %s237 = scalar_lea.sflag [#allocation6], 1
    %238 = vsyncpa %s237, 1
    %239 = vsyncpa [#allocation4], 1
    %s240 = scalar_lea.sflag [#allocation4], 1
    %241 = vsyncpa %s240, 1

</llo_original>
